<compile_context>
chip_gen: v7x
topology: tpu7x:2x2x1
jax: 0.10.0
libtpu: 0.0.40
codegen_flags: <defaults>
</compile_context>

<pallas_src>
import functools

import jax
import jax.numpy as jnp
from jax.experimental import pallas as pl
from jax.experimental.pallas import tpu as pltpu


def _round_up(x, m):
    return ((x + m - 1) // m) * m


def _mixer_kernel(x_ref, gamma_ref, beta_ref, w1_ref, b1_ref, w2_ref, b2_ref,
                  o_ref, *, eps: float, d_valid: int):
    # x_ref: (tm, Dp) tile of rows; Dp/Hp are lane-padded (multiples of 128).
    x = x_ref[...]
    xf = x.astype(jnp.float32)
    dp = xf.shape[-1]
    inv_d = 1.0 / float(d_valid)          # exact power-of-two-free scale is fine in f32

    # ---- LayerNorm over the valid feature lanes (f32 stats, biased variance) ----
    mean = jnp.sum(xf, axis=-1, keepdims=True) * inv_d          # padded lanes are 0
    xc = xf - mean
    if d_valid == dp:
        var = jnp.sum(xc * xc, axis=-1, keepdims=True) * inv_d
    else:
        lane = jax.lax.broadcasted_iota(jnp.int32, xf.shape, dimension=1)
        xcm = jnp.where(lane < d_valid, xc, 0.0)
        var = jnp.sum(xcm * xcm, axis=-1, keepdims=True) * inv_d
    inv = jax.lax.rsqrt(var + eps)
    # gamma/beta are pre-cast to f32 and zero-padded -> padded lanes of ln == 0.
    ln = (xc * inv) * gamma_ref[...] + beta_ref[...]

    # ---- Linear1 + ReLU: MXU in the stored weight dtype, f32 accumulate ----
    h = jnp.dot(ln.astype(w1_ref.dtype), w1_ref[...],
                preferred_element_type=jnp.float32) + b1_ref[...]
    h = jnp.maximum(h, 0.0)

    # ---- Linear2 ----
    y = jnp.dot(h.astype(w2_ref.dtype), w2_ref[...],
                preferred_element_type=jnp.float32) + b2_ref[...]

    # ---- residual ----
    o_ref[...] = (xf + y).astype(o_ref.dtype)


def feature_mixer_layer(x, params, *, eps=1e-5, tm=256,
                        vmem_budget_bytes=48 * 1024 * 1024):
    """x: (B, N, D). params: gamma, beta, w1 (D,H), b1, w2 (H,D), b2."""
    B, N, D = x.shape
    H = params["w1"].shape[1]
    rows = B * N

    # Lane-dense padding of feature / hidden dims.
    Dp = _round_up(D, 128)
    Hp = _round_up(H, 128)

    x_item = jnp.dtype(x.dtype).itemsize
    w_item = jnp.dtype(params["w1"].dtype).itemsize

    # Pick the largest row tile that keeps double-buffered row tiles + resident
    # weights under the VMEM budget (48 MiB default fits v7x's 64 MiB/TC;
    # v5e/v6e have 128 MiB of physical VMEM).
    def _vmem_bytes(t):
        io_tiles = 2 * 2 * t * Dp * x_item              # in + out, double buffered
        weights = 2 * 2 * Dp * Hp * w_item              # w1 + w2, double buffered
        vectors = 2 * (3 * Dp + Hp) * 4                 # gamma/beta/b1/b2 (f32)
        live = t * Hp * 4 + 3 * t * Dp * 4              # f32 intermediates
        return io_tiles + weights + vectors + live

    tm_eff = max(8, min(_round_up(tm, 8), _round_up(rows, 8)))
    while tm_eff > 8 and _vmem_bytes(tm_eff) > vmem_budget_bytes:
        tm_eff = max(8, _round_up(tm_eff // 2, 8))
    rows_p = _round_up(rows, tm_eff)
    grid = (rows_p // tm_eff,)

    # Zero-padded operands (padded lanes/rows are benign and sliced off below).
    x2 = jnp.pad(x.reshape(rows, D), ((0, rows_p - rows), (0, Dp - D)))
    gamma = jnp.pad(params["gamma"].astype(jnp.float32), (0, Dp - D)).reshape(1, Dp)
    beta = jnp.pad(params["beta"].astype(jnp.float32), (0, Dp - D)).reshape(1, Dp)
    b1 = jnp.pad(params["b1"].astype(jnp.float32), (0, Hp - H)).reshape(1, Hp)
    b2 = jnp.pad(params["b2"].astype(jnp.float32), (0, Dp - D)).reshape(1, Dp)
    w1 = jnp.pad(params["w1"], ((0, Dp - D), (0, Hp - H)))
    w2 = jnp.pad(params["w2"], ((0, Hp - H), (0, Dp - D)))

    kernel = functools.partial(_mixer_kernel, eps=eps, d_valid=D)

    flops = 2 * 2 * rows_p * Dp * Hp + 10 * rows_p * Dp
    bytes_accessed = (2 * rows_p * Dp * x_item          # x in + out
                      + 2 * Dp * Hp * w_item            # w1 + w2
                      + (3 * Dp + Hp) * 4)              # small vectors

    out = pl.pallas_call(
        kernel,
        out_shape=jax.ShapeDtypeStruct((rows_p, Dp), x.dtype),
        grid_spec=pltpu.PrefetchScalarGridSpec(
            num_scalar_prefetch=0,
            grid=grid,
            in_specs=[
                pl.BlockSpec((tm_eff, Dp), lambda i: (i, 0)),   # x rows
                pl.BlockSpec((1, Dp), lambda i: (0, 0)),        # gamma (f32)
                pl.BlockSpec((1, Dp), lambda i: (0, 0)),        # beta  (f32)
                pl.BlockSpec((Dp, Hp), lambda i: (0, 0)),       # w1
                pl.BlockSpec((1, Hp), lambda i: (0, 0)),        # b1 (f32)
                pl.BlockSpec((Hp, Dp), lambda i: (0, 0)),       # w2
                pl.BlockSpec((1, Dp), lambda i: (0, 0)),        # b2 (f32)
            ],
            out_specs=pl.BlockSpec((tm_eff, Dp), lambda i: (i, 0)),
        ),
        compiler_params=pltpu.CompilerParams(
            dimension_semantics=("parallel",),
            vmem_limit_bytes=int(min(max(vmem_budget_bytes, 32 * 1024 * 1024),
                                     100 * 1024 * 1024)),
        ),
        cost_estimate=pl.CostEstimate(
            flops=int(flops),
            transcendentals=int(rows_p),
            bytes_accessed=int(bytes_accessed)),
        input_output_aliases={0: 0},   # residual output reuses the x2 buffer
    )(x2, gamma, beta, w1, b1, w2, b2)

    return out[:rows, :D].reshape(B, N, D)


def init_params(key, in_dim, mlp_ratio=1, dtype=jnp.float32):
    """Deterministic init mirroring the PyTorch __init__:
       Linear weights ~ trunc_normal(std=0.02), biases zero,
       LayerNorm gamma=1, beta=0."""
    hidden = int(in_dim * mlp_ratio)
    k1, k2 = jax.random.split(key)

    def trunc_normal(k, shape, std=0.02):
        v = jax.random.normal(k, shape, dtype=jnp.float32) * std
        return jnp.clip(v, -2.0, 2.0).astype(dtype)

    # torch Linear stores weight as (out, in); kernel uses (in, out) => transpose.
    w1 = trunc_normal(k1, (hidden, in_dim)).T
    w2 = trunc_normal(k2, (in_dim, hidden)).T
    return {
        "gamma": jnp.ones((in_dim,), dtype),
        "beta": jnp.zeros((in_dim,), dtype),
        "w1": jnp.asarray(w1, dtype),
        "b1": jnp.zeros((hidden,), dtype),
        "w2": jnp.asarray(w2, dtype),
        "b2": jnp.zeros((in_dim,), dtype),
    }


def _reference(x, p, eps=1e-5):
    mean = jnp.mean(x, axis=-1, keepdims=True)
    var = jnp.mean((x - mean) ** 2, axis=-1, keepdims=True)
    ln = (x - mean) / jnp.sqrt(var + eps) * p["gamma"] + p["beta"]
    h = jnp.maximum(ln @ p["w1"] + p["b1"], 0.0)
    return x + (h @ p["w2"] + p["b2"])


if __name__ == "__main__":
    key = jax.random.PRNGKey(0)
    kx, kp = jax.random.split(key)

    # batch=2, seq=9 (rows=18, exercises row padding), in_dim=32, mlp_ratio=1
    B, N, D = 2, 9, 32
    x = jax.random.normal(kx, (B, N, D), dtype=jnp.float32)
    params = init_params(kp, in_dim=D, mlp_ratio=1)

    out = jax.jit(feature_mixer_layer)(x, params)
    out = jax.block_until_ready(out)

    ref = _reference(x, params)
    assert out.shape == x.shape
    assert bool(jnp.all(jnp.isfinite(out))), "non-finite output"
    assert jnp.allclose(out, ref, atol=5e-5, rtol=5e-5), "mismatch vs reference"
    print("KERNEL_OK")
</pallas_src>

<mosaic_0001>
module attributes {stable_mosaic.version = 11 : i64} {
  func.func @_mixer_kernel(%arg0: i32, %arg1: memref<24x128xf32, #tpu.memory_space<vmem>>, %arg2: memref<1x128xf32, #tpu.memory_space<vmem>>, %arg3: memref<1x128xf32, #tpu.memory_space<vmem>>, %arg4: memref<128x128xf32, #tpu.memory_space<vmem>>, %arg5: memref<1x128xf32, #tpu.memory_space<vmem>>, %arg6: memref<128x128xf32, #tpu.memory_space<vmem>>, %arg7: memref<1x128xf32, #tpu.memory_space<vmem>>, %arg8: memref<24x128xf32, #tpu.memory_space<vmem>>) attributes {dimension_semantics = [#tpu.dimension_semantics<parallel>], iteration_bounds = array<i64: 1>, scalar_prefetch = 0 : i64, scratch_operands = 0 : i64, tpu.core_type = #tpu.core_type<tc>, window_params = [{transform_indices = @transform_0, window_bounds = array<i64: 24, 128>}, {pipeline_mode = #tpu.pipeline_mode<synchronous>, transform_indices = @transform_1, window_bounds = array<i64: 1, 128>}, {pipeline_mode = #tpu.pipeline_mode<synchronous>, transform_indices = @transform_2, window_bounds = array<i64: 1, 128>}, {pipeline_mode = #tpu.pipeline_mode<synchronous>, transform_indices = @transform_3, window_bounds = array<i64: 128, 128>}, {pipeline_mode = #tpu.pipeline_mode<synchronous>, transform_indices = @transform_4, window_bounds = array<i64: 1, 128>}, {pipeline_mode = #tpu.pipeline_mode<synchronous>, transform_indices = @transform_5, window_bounds = array<i64: 128, 128>}, {pipeline_mode = #tpu.pipeline_mode<synchronous>, transform_indices = @transform_6, window_bounds = array<i64: 1, 128>}, {transform_indices = @transform_7, window_bounds = array<i64: 24, 128>}]} {
    %c0 = arith.constant 0 : index
    %c0_0 = arith.constant 0 : index
    %0 = vector.load %arg1[%c0, %c0_0] : memref<24x128xf32, #tpu.memory_space<vmem>>, vector<24x128xf32>
    %cst = arith.constant dense<0.000000e+00> : vector<24xf32>
    %1 = vector.multi_reduction <add>, %0, %cst [1] : vector<24x128xf32> to vector<24xf32>
    %2 = vector.shape_cast %1 : vector<24xf32> to vector<24x1xf32>
    %cst_1 = arith.constant 3.125000e-02 : f32
    %3 = vector.broadcast %cst_1 : f32 to vector<24x1xf32>
    %4 = arith.mulf %2, %3 : vector<24x1xf32>
    %5 = vector.broadcast %4 : vector<24x1xf32> to vector<24x128xf32>
    %6 = arith.subf %0, %5 : vector<24x128xf32>
    %7 = tpu.iota {dimensions = array<i32: 1>} : vector<24x128xi32>
    %c32_i32 = arith.constant 32 : i32
    %8 = vector.broadcast %c32_i32 : i32 to vector<24x128xi32>
    %9 = arith.cmpi slt, %7, %8 : vector<24x128xi32>
    %cst_2 = arith.constant 0.000000e+00 : f32
    %10 = vector.broadcast %cst_2 : f32 to vector<24x128xf32>
    %11 = arith.select %9, %6, %10 : vector<24x128xi1>, vector<24x128xf32>
    %12 = arith.mulf %11, %11 : vector<24x128xf32>
    %cst_3 = arith.constant dense<0.000000e+00> : vector<24xf32>
    %13 = vector.multi_reduction <add>, %12, %cst_3 [1] : vector<24x128xf32> to vector<24xf32>
    %14 = vector.shape_cast %13 : vector<24xf32> to vector<24x1xf32>
    %cst_4 = arith.constant 3.125000e-02 : f32
    %15 = vector.broadcast %cst_4 : f32 to vector<24x1xf32>
    %16 = arith.mulf %14, %15 : vector<24x1xf32>
    %cst_5 = arith.constant 9.99999974E-6 : f32
    %17 = vector.broadcast %cst_5 : f32 to vector<24x1xf32>
    %18 = arith.addf %16, %17 : vector<24x1xf32>
    %19 = math.rsqrt %18 : vector<24x1xf32>
    %20 = vector.broadcast %19 : vector<24x1xf32> to vector<24x128xf32>
    %21 = arith.mulf %6, %20 : vector<24x128xf32>
    %c0_6 = arith.constant 0 : index
    %c0_7 = arith.constant 0 : index
    %22 = vector.load %arg2[%c0_6, %c0_7] : memref<1x128xf32, #tpu.memory_space<vmem>>, vector<1x128xf32>
    %23 = vector.broadcast %22 : vector<1x128xf32> to vector<24x128xf32>
    %24 = arith.mulf %21, %23 : vector<24x128xf32>
    %c0_8 = arith.constant 0 : index
    %c0_9 = arith.constant 0 : index
    %25 = vector.load %arg3[%c0_8, %c0_9] : memref<1x128xf32, #tpu.memory_space<vmem>>, vector<1x128xf32>
    %26 = vector.broadcast %25 : vector<1x128xf32> to vector<24x128xf32>
    %27 = arith.addf %24, %26 : vector<24x128xf32>
    %c0_10 = arith.constant 0 : index
    %c0_11 = arith.constant 0 : index
    %28 = vector.load %arg4[%c0_10, %c0_11] : memref<128x128xf32, #tpu.memory_space<vmem>>, vector<128x128xf32>
    %cst_12 = arith.constant dense<0.000000e+00> : vector<24x128xf32>
    %29 = tpu.matmul %27, %28, %cst_12 {dimension_numbers = #tpu.dot_dimension_numbers<[1], [0], [0], [1], [0, 0, 1, 1], [], []>} : vector<24x128xf32>, vector<128x128xf32>, vector<24x128xf32> -> vector<24x128xf32>
    %c0_13 = arith.constant 0 : index
    %c0_14 = arith.constant 0 : index
    %30 = vector.load %arg5[%c0_13, %c0_14] : memref<1x128xf32, #tpu.memory_space<vmem>>, vector<1x128xf32>
    %31 = vector.broadcast %30 : vector<1x128xf32> to vector<24x128xf32>
    %32 = arith.addf %29, %31 : vector<24x128xf32>
    %cst_15 = arith.constant 0.000000e+00 : f32
    %33 = vector.broadcast %cst_15 : f32 to vector<24x128xf32>
    %34 = arith.maximumf %32, %33 : vector<24x128xf32>
    %c0_16 = arith.constant 0 : index
    %c0_17 = arith.constant 0 : index
    %35 = vector.load %arg6[%c0_16, %c0_17] : memref<128x128xf32, #tpu.memory_space<vmem>>, vector<128x128xf32>
    %cst_18 = arith.constant dense<0.000000e+00> : vector<24x128xf32>
    %36 = tpu.matmul %34, %35, %cst_18 {dimension_numbers = #tpu.dot_dimension_numbers<[1], [0], [0], [1], [0, 0, 1, 1], [], []>} : vector<24x128xf32>, vector<128x128xf32>, vector<24x128xf32> -> vector<24x128xf32>
    %c0_19 = arith.constant 0 : index
    %c0_20 = arith.constant 0 : index
    %37 = vector.load %arg7[%c0_19, %c0_20] : memref<1x128xf32, #tpu.memory_space<vmem>>, vector<1x128xf32>
    %38 = vector.broadcast %37 : vector<1x128xf32> to vector<24x128xf32>
    %39 = arith.addf %36, %38 : vector<24x128xf32>
    %40 = arith.addf %0, %39 : vector<24x128xf32>
    %c0_21 = arith.constant 0 : index
    %c0_22 = arith.constant 0 : index
    %41 = vector.load %arg8[%c0_21, %c0_22] : memref<24x128xf32, #tpu.memory_space<vmem>>, vector<24x128xf32>
    tpu.vector_store %arg8[%c0_21, %c0_22], %40 {strides = array<i32>} : memref<24x128xf32, #tpu.memory_space<vmem>>, vector<24x128xf32>,
    return
  }
  func.func @transform_0(%arg0: i32) -> (i32, i32) {
    %c0_i32 = arith.constant 0 : i32
    %c0_i32_0 = arith.constant 0 : i32
    return %arg0, %c0_i32 : i32, i32
  }
  func.func @transform_1(%arg0: i32) -> (i32, i32) {
    %c0_i32 = arith.constant 0 : i32
    %c0_i32_0 = arith.constant 0 : i32
    %c0_i32_1 = arith.constant 0 : i32
    return %c0_i32, %c0_i32_0 : i32, i32
  }
  func.func @transform_2(%arg0: i32) -> (i32, i32) {
    %c0_i32 = arith.constant 0 : i32
    %c0_i32_0 = arith.constant 0 : i32
    %c0_i32_1 = arith.constant 0 : i32
    return %c0_i32, %c0_i32_0 : i32, i32
  }
  func.func @transform_3(%arg0: i32) -> (i32, i32) {
    %c0_i32 = arith.constant 0 : i32
    %c0_i32_0 = arith.constant 0 : i32
    %c0_i32_1 = arith.constant 0 : i32
    return %c0_i32, %c0_i32_0 : i32, i32
  }
  func.func @transform_4(%arg0: i32) -> (i32, i32) {
    %c0_i32 = arith.constant 0 : i32
    %c0_i32_0 = arith.constant 0 : i32
    %c0_i32_1 = arith.constant 0 : i32
    return %c0_i32, %c0_i32_0 : i32, i32
  }
  func.func @transform_5(%arg0: i32) -> (i32, i32) {
    %c0_i32 = arith.constant 0 : i32
    %c0_i32_0 = arith.constant 0 : i32
    %c0_i32_1 = arith.constant 0 : i32
    return %c0_i32, %c0_i32_0 : i32, i32
  }
  func.func @transform_6(%arg0: i32) -> (i32, i32) {
    %c0_i32 = arith.constant 0 : i32
    %c0_i32_0 = arith.constant 0 : i32
    %c0_i32_1 = arith.constant 0 : i32
    return %c0_i32, %c0_i32_0 : i32, i32
  }
  func.func @transform_7(%arg0: i32) -> (i32, i32) {
    %c0_i32 = arith.constant 0 : i32
    %c0_i32_0 = arith.constant 0 : i32
    return %arg0, %c0_i32 : i32, i32
  }
}

</mosaic_0001>

<llo_original>
// kernel: feature_mixer_layer.1
$region0: #{feature_mixer_layer.1}
  #allocation0 [shape = 'u32[]', space=smem, size = 0x4, offset = 0x4, fixed_abs, tag = 'smem constant byte address 0x4 - core index']
  #allocation1 [shape = 'u32[144,128]{1,0:T(1,128)}', space=vmem, size = 0x12000, scoped, tag = 'internal scratch']
  %s0 = inlined_call_operand.vmem [shape: f32[24,128], index: 0, kind: input, shape index: {}, may-alias: {0,7}]
  %s1 = inlined_call_operand.vmem [shape: f32[1,128], index: 1, kind: input, shape index: {}]
  %s2 = inlined_call_operand.vmem [shape: f32[1,128], index: 2, kind: input, shape index: {}]
  %s3 = inlined_call_operand.vmem [shape: f32[128,128], index: 3, kind: input, shape index: {}]
  %s4 = inlined_call_operand.vmem [shape: f32[1,128], index: 4, kind: input, shape index: {}]
  %s5 = inlined_call_operand.vmem [shape: f32[128,128], index: 5, kind: input, shape index: {}]
  %s6 = inlined_call_operand.vmem [shape: f32[1,128], index: 6, kind: input, shape index: {}]
  %s7 = inlined_call_operand.vmem [shape: f32[24,128], index: 7, kind: output, shape index: {}, may-alias: {0,7}]
  %s8 = sld [smem:[#allocation0]]
  $region38: #{feature_mixer_layer.1} parent=0
    _
  %s10 = ssub.s32 1, %s8
  %s11 = scalar_select 0, %s10, %s8
  // Predicated region
  $region2: #{feature_mixer_layer.1} parent=0 // pred_check
    _
  $region3: #{feature_mixer_layer.1} parent=0 // pred_check_branch
    %13 = sbr.rel (0) target = $region5
  $region4: #{feature_mixer_layer.1} parent=0 // pred_region
    _
  $region5: #{feature_mixer_layer.1} parent=0 // pred_fallthru
    _
  // Predicated region
  $region6: #{feature_mixer_layer.1} parent=0 // pred_check
    _
  $region7: #{feature_mixer_layer.1} parent=0 // pred_check_branch
    %15 = sbr.rel (0) target = $region9
  $region8: #{feature_mixer_layer.1} parent=0 // pred_region
    _
  $region9: #{feature_mixer_layer.1} parent=0 // pred_fallthru
    _
  // Predicated region
  $region10: #{feature_mixer_layer.1} parent=0 // pred_check
    _
  $region11: #{feature_mixer_layer.1} parent=0 // pred_check_branch
    %17 = sbr.rel (0) target = $region13
  $region12: #{feature_mixer_layer.1} parent=0 // pred_region
    _
  $region13: #{feature_mixer_layer.1} parent=0 // pred_fallthru
    _
  // Predicated region
  $region14: #{feature_mixer_layer.1} parent=0 // pred_check
    _
  $region15: #{feature_mixer_layer.1} parent=0 // pred_check_branch
    %19 = sbr.rel (0) target = $region17
  $region16: #{feature_mixer_layer.1} parent=0 // pred_region
    _
  $region17: #{feature_mixer_layer.1} parent=0 // pred_fallthru
    _
  // Predicated region
  $region18: #{feature_mixer_layer.1} parent=0 // pred_check
    _
  $region19: #{feature_mixer_layer.1} parent=0 // pred_check_branch
    %21 = sbr.rel (0) target = $region21
  $region20: #{feature_mixer_layer.1} parent=0 // pred_region
    _
  $region21: #{feature_mixer_layer.1} parent=0 // pred_fallthru
    _
  // Predicated region
  $region22: #{feature_mixer_layer.1} parent=0 // pred_check
    _
  $region23: #{feature_mixer_layer.1} parent=0 // pred_check_branch
    %23 = sbr.rel (0) target = $region25
  $region24: #{feature_mixer_layer.1} parent=0 // pred_region
    _
  $region25: #{feature_mixer_layer.1} parent=0 // pred_fallthru
    _
  // Predicated region
  $region26: #{feature_mixer_layer.1} parent=0 // pred_check
    _
  $region27: #{feature_mixer_layer.1} parent=0 // pred_check_branch
    %25 = sbr.rel (0) target = $region29
  $region28: #{feature_mixer_layer.1} parent=0 // pred_region
    _
  $region29: #{feature_mixer_layer.1} parent=0 // pred_fallthru
    _
  %v26 = vld [vmem:[%s0] sm:$0xff]
  %v27 = vld [vmem:[%s0 + $0x8] sm:$0xff]
  %v28 = vld [vmem:[%s0 + $0x10] sm:$0xff]
  %29 = vadd.xlane.f32.xlu0 %v26
  %v30 = vpop.xlane.xlu0 %29
  %31 = vadd.xlane.f32.xlu0 %v27
  %v32 = vpop.xlane.xlu0 %31
  %33 = vadd.xlane.f32.xlu0 %v28
  %v34 = vpop.xlane.xlu0 %33
  %v35 = vmul.f32 %v30, 0.03125
  %v36 = vmul.f32 %v32, 0.03125
  %v37 = vmul.f32 %v34, 0.03125
  %v38 = vsub.f32 %v26, %v35
  %v39 = vsub.f32 %v27, %v36
  %v40 = vsub.f32 %v28, %v37
  %v41 = vlaneseq
  %v42 = vand.u32 %v41, 127
  %vm43 = vcmp.lt.s32.totalorder %v42, 32
  %v44 = vsel %vm43, %v38, 0.0
  %v45 = vsel %vm43, %v39, 0.0
  %v46 = vsel %vm43, %v40, 0.0
  %v47 = vmul.f32 %v44, %v44
  %v48 = vmul.f32 %v45, %v45
  %v49 = vmul.f32 %v46, %v46
  %50 = vadd.xlane.f32.xlu0 %v47
  %v51 = vpop.xlane.xlu0 %50
  %52 = vadd.xlane.f32.xlu0 %v48
  %v53 = vpop.xlane.xlu0 %52
  %54 = vadd.xlane.f32.xlu0 %v49
  %v55 = vpop.xlane.xlu0 %54
  %v56 = vmul.f32 %v51, 0.03125
  %v57 = vmul.f32 %v53, 0.03125
  %v58 = vmul.f32 %v55, 0.03125
  %v59 = vadd.f32 %v56, 1e-05
  %v60 = vadd.f32 %v57, 1e-05
  %v61 = vadd.f32 %v58, 1e-05
  %v62 = vrsqrt.pop %v59
  %v63 = vrsqrt.pop %v60
  %v64 = vrsqrt.pop %v61
  %v65 = vmul.f32 %v38, %v62
  %v66 = vmul.f32 %v39, %v63
  %v67 = vmul.f32 %v40, %v64
  %v68 = vld [vmem:[%s1] sm:$0x1]
  %v70 = vlaneseq
  %v71 = vshrl.u32 %v70, 7
  %v72 = vsub.s32 0, %v71
  %v73 = vrot.slane %v68, %v72
  %v75 = vmul.f32 %v65, %v73
  %v76 = vmul.f32 %v66, %v73
  %v77 = vmul.f32 %v67, %v73
  %v78 = vld [vmem:[%s2] sm:$0x1]
  %v80 = vlaneseq
  %v81 = vshrl.u32 %v80, 7
  %v82 = vsub.s32 0, %v81
  %v83 = vrot.slane %v78, %v82
  %v85 = vadd.f32 %v75, %v83
  %v86 = vadd.f32 %v76, %v83
  %v87 = vadd.f32 %v77, %v83
  %v88 = vld [vmem:[%s3] sm:$0xff]
  %v89 = vld [vmem:[%s3 + $0x8] sm:$0xff]
  %v90 = vld [vmem:[%s3 + $0x10] sm:$0xff]
  %v91 = vld [vmem:[%s3 + $0x18] sm:$0xff]
  %v92 = vld [vmem:[%s3 + $0x20] sm:$0xff]
  %v93 = vld [vmem:[%s3 + $0x28] sm:$0xff]
  %v94 = vld [vmem:[%s3 + $0x30] sm:$0xff]
  %v95 = vld [vmem:[%s3 + $0x38] sm:$0xff]
  %v96 = vld [vmem:[%s3 + $0x40] sm:$0xff]
  %v97 = vld [vmem:[%s3 + $0x48] sm:$0xff]
  %v98 = vld [vmem:[%s3 + $0x50] sm:$0xff]
  %v99 = vld [vmem:[%s3 + $0x58] sm:$0xff]
  %v100 = vld [vmem:[%s3 + $0x60] sm:$0xff]
  %v101 = vld [vmem:[%s3 + $0x68] sm:$0xff]
  %v102 = vld [vmem:[%s3 + $0x70] sm:$0xff]
  %v103 = vld [vmem:[%s3 + $0x78] sm:$0xff]
  %v104 = vld [vmem:[%s4] sm:$0x1]
  %v106 = vlaneseq
  %v107 = vshrl.u32 %v106, 7
  %v108 = vsub.s32 0, %v107
  %v109 = vrot.slane %v104, %v108
  %111 = vmatprep.subr.mxu0 0.0
  %112 = vmatpush1.msra.mxu0 %v88
  %113 = vmatprep.subr.mxu0 0.0
  %114 = vmatpush1.msra.mxu0 %v89
  %115 = vmatprep.subr.mxu0 0.0
  %116 = vmatpush1.msra.mxu0 %v90
  %117 = vmatprep.subr.mxu0 0.0
  %118 = vmatpush1.msra.mxu0 %v91
  %119 = vmatprep.subr.mxu0 0.0
  %120 = vmatpush1.msra.mxu0 %v92
  %121 = vmatprep.subr.mxu0 0.0
  %122 = vmatpush1.msra.mxu0 %v93
  %123 = vmatprep.subr.mxu0 0.0
  %124 = vmatpush1.msra.mxu0 %v94
  %125 = vmatprep.subr.mxu0 0.0
  %126 = vmatpush1.msra.mxu0 %v95
  %127 = vmatprep.subr.mxu0 0.0
  %128 = vmatpush1.msra.mxu0 %v96
  %129 = vmatprep.subr.mxu0 0.0
  %130 = vmatpush1.msra.mxu0 %v97
  %131 = vmatprep.subr.mxu0 0.0
  %132 = vmatpush1.msra.mxu0 %v98
  %133 = vmatprep.subr.mxu0 0.0
  %134 = vmatpush1.msra.mxu0 %v99
  %135 = vmatprep.subr.mxu0 0.0
  %136 = vmatpush1.msra.mxu0 %v100
  %137 = vmatprep.subr.mxu0 0.0
  %138 = vmatpush1.msra.mxu0 %v101
  %139 = vmatprep.subr.mxu0 0.0
  %140 = vmatpush1.msra.mxu0 %v102
  %141 = vmatprep.subr.mxu0 0.0
  %142 = vmatpush1.msra.mxu0 %v103
  %143 = vmatprep.subr.mxu0 0.0
  %144 = vmatpush1.msra.mxu0 0.0
  %145 = vmatprep.subr.mxu0 0.0
  %146 = vmatpush1.msra.mxu0 0.0
  %147 = vmatprep.subr.mxu0 0.0
  %148 = vmatpush1.msra.mxu0 0.0
  %149 = vmatprep.subr.mxu0 0.0
  %150 = vmatpush1.msra.mxu0 0.0
  %151 = vmatprep.subr.mxu0 0.0
  %152 = vmatpush1.msra.mxu0 0.0
  %153 = vmatprep.subr.mxu0 0.0
  %154 = vmatpush1.msra.mxu0 0.0
  %155 = vmatprep.subr.mxu0 0.0
  %156 = vmatpush1.msra.mxu0 0.0
  %157 = vmatprep.subr.mxu0 0.0
  %158 = vmatpush1.msra.mxu0 0.0
  %159 = vmatprep.subr.mxu0 0.0
  %160 = vmatpush1.msra.mxu0 0.0
  %161 = vmatprep.subr.mxu0 0.0
  %162 = vmatpush1.msra.mxu0 0.0
  %163 = vmatprep.subr.mxu0 0.0
  %164 = vmatpush1.msra.mxu0 0.0
  %165 = vmatprep.subr.mxu0 0.0
  %166 = vmatpush1.msra.mxu0 0.0
  %167 = vmatprep.subr.mxu0 0.0
  %168 = vmatpush1.msra.mxu0 0.0
  %169 = vmatprep.subr.mxu0 0.0
  %170 = vmatpush1.msra.mxu0 0.0
  %171 = vmatprep.subr.mxu0 0.0
  %172 = vmatpush1.msra.mxu0 0.0
  %173 = vmatprep.subr.mxu0 0.0
  %174 = vmatpush1.msra.mxu0 0.0
  %175 = vmatprep.mubr.f32.mxu0 0.0
  %176 = vmatmul.mubr.f32.gmra.mrb[0].mxu0 %v85
  %v177 = vpop.f32.mrb[0].mxu0
  %v178 = vadd.f32 %v109, %v177
  %v179 = vpop.f32.mrb[0].mxu0
  %180 = vmatprep.mubr.f32.mxu0 0.0
  %181 = vmatmul.mubr.f32.gmra.mrb[0].mxu0 %v86
  %v182 = vpop.f32.mrb[0].mxu0
  %v183 = vadd.f32 %v109, %v182
  %v184 = vpop.f32.mrb[0].mxu0
  %185 = vmatprep.mubr.f32.mxu0 0.0
  %186 = vmatmul.mubr.f32.gmra.mrb[0].mxu0 %v87
  %v187 = vpop.f32.mrb[0].mxu0
  %v188 = vadd.f32 %v109, %v187
  %v189 = vpop.f32.mrb[0].mxu0
  %190 = vdwg.mxu0
  %v191 = vmax.f32 %v178, 0.0
  %v192 = vmax.f32 %v183, 0.0
  %v193 = vmax.f32 %v188, 0.0
  %v194 = vld [vmem:[%s5] sm:$0xff]
  %v195 = vld [vmem:[%s5 + $0x8] sm:$0xff]
  %v196 = vld [vmem:[%s5 + $0x10] sm:$0xff]
  %v197 = vld [vmem:[%s5 + $0x18] sm:$0xff]
  %v198 = vld [vmem:[%s5 + $0x20] sm:$0xff]
  %v199 = vld [vmem:[%s5 + $0x28] sm:$0xff]
  %v200 = vld [vmem:[%s5 + $0x30] sm:$0xff]
  %v201 = vld [vmem:[%s5 + $0x38] sm:$0xff]
  %v202 = vld [vmem:[%s5 + $0x40] sm:$0xff]
  %v203 = vld [vmem:[%s5 + $0x48] sm:$0xff]
  %v204 = vld [vmem:[%s5 + $0x50] sm:$0xff]
  %v205 = vld [vmem:[%s5 + $0x58] sm:$0xff]
  %v206 = vld [vmem:[%s5 + $0x60] sm:$0xff]
  %v207 = vld [vmem:[%s5 + $0x68] sm:$0xff]
  %v208 = vld [vmem:[%s5 + $0x70] sm:$0xff]
  %v209 = vld [vmem:[%s5 + $0x78] sm:$0xff]
  %v210 = vld [vmem:[%s6] sm:$0x1]
  %v212 = vlaneseq
  %v213 = vshrl.u32 %v212, 7
  %v214 = vsub.s32 0, %v213
  %v215 = vrot.slane %v210, %v214
  %217 = vmatprep.subr.mxu0 0.0
  %218 = vmatpush1.msra.mxu0 %v194
  %219 = vmatprep.subr.mxu0 0.0
  %220 = vmatpush1.msra.mxu0 %v195
  %221 = vmatprep.subr.mxu0 0.0
  %222 = vmatpush1.msra.mxu0 %v196
  %223 = vmatprep.subr.mxu0 0.0
  %224 = vmatpush1.msra.mxu0 %v197
  %225 = vmatprep.subr.mxu0 0.0
  %226 = vmatpush1.msra.mxu0 %v198
  %227 = vmatprep.subr.mxu0 0.0
  %228 = vmatpush1.msra.mxu0 %v199
  %229 = vmatprep.subr.mxu0 0.0
  %230 = vmatpush1.msra.mxu0 %v200
  %231 = vmatprep.subr.mxu0 0.0
  %232 = vmatpush1.msra.mxu0 %v201
  %233 = vmatprep.subr.mxu0 0.0
  %234 = vmatpush1.msra.mxu0 %v202
  %235 = vmatprep.subr.mxu0 0.0
  %236 = vmatpush1.msra.mxu0 %v203
  %237 = vmatprep.subr.mxu0 0.0
  %238 = vmatpush1.msra.mxu0 %v204
  %239 = vmatprep.subr.mxu0 0.0
  %240 = vmatpush1.msra.mxu0 %v205
  %241 = vmatprep.subr.mxu0 0.0
  %242 = vmatpush1.msra.mxu0 %v206
  %243 = vmatprep.subr.mxu0 0.0
  %244 = vmatpush1.msra.mxu0 %v207
  %245 = vmatprep.subr.mxu0 0.0
  %246 = vmatpush1.msra.mxu0 %v208
  %247 = vmatprep.subr.mxu0 0.0
  %248 = vmatpush1.msra.mxu0 %v209
  %249 = vmatprep.subr.mxu0 0.0
  %250 = vmatpush1.msra.mxu0 0.0
  %251 = vmatprep.subr.mxu0 0.0
  %252 = vmatpush1.msra.mxu0 0.0
  %253 = vmatprep.subr.mxu0 0.0
  %254 = vmatpush1.msra.mxu0 0.0
  %255 = vmatprep.subr.mxu0 0.0
  %256 = vmatpush1.msra.mxu0 0.0
  %257 = vmatprep.subr.mxu0 0.0
  %258 = vmatpush1.msra.mxu0 0.0
  %259 = vmatprep.subr.mxu0 0.0
  %260 = vmatpush1.msra.mxu0 0.0
  %261 = vmatprep.subr.mxu0 0.0
  %262 = vmatpush1.msra.mxu0 0.0
  %263 = vmatprep.subr.mxu0 0.0
  %264 = vmatpush1.msra.mxu0 0.0
  %265 = vmatprep.subr.mxu0 0.0
  %266 = vmatpush1.msra.mxu0 0.0
  %267 = vmatprep.subr.mxu0 0.0
  %268 = vmatpush1.msra.mxu0 0.0
  %269 = vmatprep.subr.mxu0 0.0
  %270 = vmatpush1.msra.mxu0 0.0
  %271 = vmatprep.subr.mxu0 0.0
  %272 = vmatpush1.msra.mxu0 0.0
  %273 = vmatprep.subr.mxu0 0.0
  %274 = vmatpush1.msra.mxu0 0.0
  %275 = vmatprep.subr.mxu0 0.0
  %276 = vmatpush1.msra.mxu0 0.0
  %277 = vmatprep.subr.mxu0 0.0
  %278 = vmatpush1.msra.mxu0 0.0
  %279 = vmatprep.subr.mxu0 0.0
  %280 = vmatpush1.msra.mxu0 0.0
  %281 = vmatprep.mubr.f32.mxu0 0.0
  %282 = vmatmul.mubr.f32.gmra.mrb[0].mxu0 %v191
  %v283 = vpop.f32.mrb[0].mxu0
  %v284 = vadd.f32 %v215, %v283
  %v285 = vpop.f32.mrb[0].mxu0
  %286 = vmatprep.mubr.f32.mxu0 0.0
  %287 = vmatmul.mubr.f32.gmra.mrb[0].mxu0 %v192
  %v288 = vpop.f32.mrb[0].mxu0
  %v289 = vadd.f32 %v215, %v288
  %v290 = vpop.f32.mrb[0].mxu0
  %291 = vmatprep.mubr.f32.mxu0 0.0
  %292 = vmatmul.mubr.f32.gmra.mrb[0].mxu0 %v193
  %v293 = vpop.f32.mrb[0].mxu0
  %v294 = vadd.f32 %v215, %v293
  %v295 = vpop.f32.mrb[0].mxu0
  %296 = vdwg.mxu0
  %v297 = vadd.f32 %v26, %v284
  %v298 = vadd.f32 %v27, %v289
  %v299 = vadd.f32 %v28, %v294
  %300 = vst [vmem:[%s7] sm:$0xff] %v297
  %301 = vst [vmem:[%s7 + $0x8] sm:$0xff] %v298
  %302 = vst [vmem:[%s7 + $0x10] sm:$0xff] %v299
  // Predicated region
  $region30: #{feature_mixer_layer.1} parent=0 // pred_check
    _
  $region31: #{feature_mixer_layer.1} parent=0 // pred_check_branch
    %304 = sbr.rel (0) target = $region33
  $region32: #{feature_mixer_layer.1} parent=0 // pred_region
    _
  $region33: #{feature_mixer_layer.1} parent=0 // pred_fallthru
    _
  // Predicated region
  $region34: #{feature_mixer_layer.1} parent=0 // pred_check
    _
  $region35: #{feature_mixer_layer.1} parent=0 // pred_check_branch
    %306 = sbr.rel (0) target = $region37
  $region36: #{feature_mixer_layer.1} parent=0 // pred_region
    _
  $region37: #{feature_mixer_layer.1} parent=0 // pred_fallthru
    _

</llo_original>
